<compile_context>
chip_gen: v7x
topology: tpu7x:2x2x1
jax: 0.10.0
libtpu: 0.0.40
codegen_flags: <defaults>
</compile_context>

<pallas_src>
import math

import jax
import jax.numpy as jnp
from jax.experimental import pallas as pl
from jax.experimental.pallas import tpu as pltpu


def _linear_self_attn_kernel(x_ref, w_ref, b_ref, mask_ref, out_ref, acc_ref):
    """One (batch-tile, H-tile) grid step.

    x_ref:    (tb, L, th) input dtype (f32 or bf16)
    w_ref:    (1, th)     float32  (slice of nn.Linear(H, 1).weight)
    b_ref:    (1,)        float32  SMEM scalar (nn.Linear(H, 1).bias)
    mask_ref: (tb, L)     int32    (nonzero == masked)
    out_ref:  (tb, L)     float32
    acc_ref:  (tb, L)     float32  scratch accumulator for the H reduction
    """
    h = pl.program_id(1)

    @pl.when(h == 0)
    def _():
        acc_ref[...] = jnp.zeros_like(acc_ref)

    # Partial H-reduction for this H tile.  Upcast x to f32 for the multiply
    # (free under the DMA; avoids bf16 product error), weight is already f32.
    x = x_ref[...].astype(jnp.float32)              # (tb, L, th)
    w = w_ref[...]                                  # (1, th) f32
    acc_ref[...] += jnp.sum(x * w[None, :, :], axis=-1)   # (tb, L) f32

    @pl.when(h == pl.num_programs(1) - 1)
    def _():
        scores = acc_ref[...] + b_ref[0]                        # SMEM scalar bias
        # scores.masked_fill_(x_mask, -inf)
        scores = jnp.where(mask_ref[...] != 0, -jnp.inf, scores)
        # softmax over the sequence axis (dim=1 of the (B, L) scores)
        m = jnp.max(scores, axis=-1, keepdims=True)
        e = jnp.exp(scores - m)
        s = jnp.sum(e, axis=-1, keepdims=True)
        # Exact divide (approx reciprocal would exceed the 1e-5 tolerance).
        out_ref[...] = (e / s).astype(out_ref.dtype)


def _select_batch_tile(B, x_row_bytes, aux_row_bytes, tile_budget,
                       min_steps=4, x_buf_floor=2 << 20):
    """Largest batch tile (multiple of 8 dividing B) whose double-buffered
    tiles fit `tile_budget`, shrunk toward >= min_steps grid steps as long as
    a single x buffer stays above the per-step-overhead amortization floor."""
    cands = sorted(t for t in range(8, B + 1, 8) if B % t == 0)
    if not cands:
        # Small, unaligned batch: one full-array block (correct, unpipelined).
        return B
    per_row = 2 * x_row_bytes + aux_row_bytes
    fitting = [t for t in cands if t * per_row <= tile_budget] or cands[:1]
    # "Small problem": even the largest fitting tile is below the roofline
    # floor -> just maximize grid steps (pipelining / v7x core balance).
    small_problem = fitting[-1] * x_row_bytes < x_buf_floor
    tb = fitting[-1]
    for t in reversed(fitting[:-1]):
        if B // tb >= min_steps:
            break
        if not small_problem and t * x_row_bytes < x_buf_floor:
            break
        tb = t
    return tb


def linear_self_attn(x, x_mask, weight, bias, *, vmem_limit_bytes=None):
    """x: (B, L, H); x_mask: (B, L) bool; weight: (1, H); bias: (1,).

    Bandwidth-bound: prefer bf16 x on every generation (v5e included — its VPU
    upconverts, but HBM bytes halve); the H-reduction always accumulates in f32.
    """
    B, L, H = x.shape
    itemsize = jnp.dtype(x.dtype).itemsize

    # ---- generation-aware VMEM budget -------------------------------------
    try:
        vmem_cap = pltpu.get_tpu_info().vmem_capacity_bytes
    except Exception:
        vmem_cap = 64 * 1024 * 1024          # v7x-safe fallback
    if vmem_limit_bytes is None:
        # ~100 MiB on v5e/v6e (128 MiB physical), ~48 MiB on v7x (64 MiB).
        vmem_limit_bytes = max(32 << 20, min(vmem_cap - (16 << 20), 100 << 20))
    # Headroom inside the scoped limit for compiler-internal scratch.
    tile_budget = max(vmem_limit_bytes - (8 << 20), 4 << 20)

    # Per-batch-row bytes of the non-x tiles: 2x mask (i32) + 2x out (f32)
    # double buffers + f32 accumulator scratch.
    aux_row = 20 * L

    def tile_bytes(tb, th):
        return tb * (2 * L * th * itemsize + aux_row) + 2 * th * 4

    # ---- H tile: full H unless the minimum batch tile would overflow VMEM --
    tb_min = 8 if B % 8 == 0 else B
    th = H
    if tile_bytes(tb_min, H) > tile_budget and H % 128 == 0:
        th = 128
        for c in reversed([c for c in range(128, H, 128) if H % c == 0]):
            if tile_bytes(tb_min, c) <= tile_budget:
                th = c
                break

    # ---- batch tile ---------------------------------------------------------
    tb = _select_batch_tile(B, L * th * itemsize, aux_row, tile_budget)

    grid = (B // tb, H // th)

    mask_i32 = x_mask.astype(jnp.int32)
    bias_smem = bias.reshape(1).astype(jnp.float32)
    weight_f32 = weight.astype(jnp.float32)          # pre-cast once in the wrapper

    return pl.pallas_call(
        _linear_self_attn_kernel,
        out_shape=jax.ShapeDtypeStruct((B, L), jnp.float32),
        grid_spec=pltpu.PrefetchScalarGridSpec(
            num_scalar_prefetch=0,
            grid=grid,
            in_specs=[
                # x: one (batch, H) tile per grid step -> auto double-buffered DMA.
                pl.BlockSpec((tb, L, th), lambda i, h: (i, 0, h)),
                # weight: H-tile slice, constant in the batch axis (tiny refetch).
                pl.BlockSpec((1, th), lambda i, h: (0, h)),
                # bias: scalar parameter in SMEM (no padded VMEM tile).
                pl.BlockSpec(memory_space=pltpu.MemorySpace.SMEM),
                # mask tile matching the batch tile (constant across H steps).
                pl.BlockSpec((tb, L), lambda i, h: (i, 0)),
            ],
            out_specs=pl.BlockSpec((tb, L), lambda i, h: (i, 0)),
            scratch_shapes=[pltpu.VMEM((tb, L), jnp.float32)],
        ),
        compiler_params=pltpu.CompilerParams(
            # Batch rows independent -> shard across v7x's 2 TensorCores;
            # H is the sequential reduction axis (accumulator pattern).
            dimension_semantics=("parallel", "arbitrary"),
            vmem_limit_bytes=vmem_limit_bytes,
        ),
    )(x, weight_f32, bias_smem, mask_i32)


def _reference(x, x_mask, weight, bias):
    """Plain-JAX reference mirroring the PyTorch forward (eval mode)."""
    scores = jnp.einsum("blh,oh->bl", x.astype(jnp.float32),
                        weight.astype(jnp.float32)) + bias[0]
    scores = jnp.where(x_mask, -jnp.inf, scores)
    return jax.nn.softmax(scores, axis=1)


def _make_inputs(key, B, L, H, dtype=jnp.float32):
    kx, kw, kb = jax.random.split(key, 3)
    bound = 1.0 / math.sqrt(H)        # nn.Linear(H, 1)-style init
    weight = jax.random.uniform(kw, (1, H), jnp.float32, minval=-bound, maxval=bound)
    bias = jax.random.uniform(kb, (1,), jnp.float32, minval=-bound, maxval=bound)
    x = jax.random.normal(kx, (B, L, H), dtype=dtype)
    # Padding-style mask; every row keeps >= 1 valid token (avoids the NaN
    # fully-masked corner case, which would also NaN in the PyTorch reference).
    lengths = (jnp.arange(B, dtype=jnp.int32) % L) + 1
    x_mask = jnp.arange(L, dtype=jnp.int32)[None, :] >= lengths[:, None]
    return x, x_mask, weight, bias


if __name__ == "__main__":
    key = jax.random.PRNGKey(0)
    k1, k2 = jax.random.split(key)

    # Test 1: small shapes (module-typical); B=16 so the batch-tiled pipeline
    # runs 2 grid steps even though the tiles are tiny.
    B, L, H = 16, 8, 32
    x, x_mask, weight, bias = _make_inputs(k1, B, L, H)
    alpha = jax.block_until_ready(linear_self_attn(x, x_mask, weight, bias))
    ref = _reference(x, x_mask, weight, bias)
    assert alpha.shape == (B, L)
    assert jnp.allclose(alpha, ref, atol=1e-5, rtol=1e-5), "mismatch (test 1)"

    # Test 2: wider H with an artificially small VMEM limit to force the
    # trailing H grid axis + accumulator path (H split into 128-multiple tiles).
    B2, L2, H2 = 16, 128, 1024
    x2, x_mask2, weight2, bias2 = _make_inputs(k2, B2, L2, H2)
    alpha2 = jax.block_until_ready(
        linear_self_attn(x2, x_mask2, weight2, bias2,
                         vmem_limit_bytes=12 * 1024 * 1024))
    ref2 = _reference(x2, x_mask2, weight2, bias2)
    assert alpha2.shape == (B2, L2)
    assert jnp.allclose(alpha2, ref2, atol=1e-5, rtol=1e-5), "mismatch (test 2)"

    print("KERNEL_OK")
</pallas_src>

<mosaic_0001>
module attributes {stable_mosaic.version = 11 : i64} {
  func.func @_linear_self_attn_kernel(%arg0: i32, %arg1: i32, %arg2: memref<8x8x32xf32, #tpu.memory_space<vmem>>, %arg3: memref<1x32xf32, #tpu.memory_space<vmem>>, %arg4: memref<1xf32, #tpu.memory_space<smem>>, %arg5: memref<8x8xi32, #tpu.memory_space<vmem>>, %arg6: memref<8x8xf32, #tpu.memory_space<vmem>>, %arg7: memref<8x8xf32, #tpu.memory_space<vmem>>) attributes {dimension_semantics = [#tpu.dimension_semantics<parallel>, #tpu.dimension_semantics<arbitrary>], iteration_bounds = array<i64: 2, 1>, scalar_prefetch = 0 : i64, scratch_operands = 1 : i64, tpu.core_type = #tpu.core_type<tc>, window_params = [{transform_indices = @transform_0, window_bounds = array<i64: 8, 8, 32>}, {transform_indices = @transform_1, window_bounds = array<i64: 1, 32>}, {transform_indices = @transform_2, window_bounds = array<i64: 1>}, {transform_indices = @transform_3, window_bounds = array<i64: 8, 8>}, {transform_indices = @transform_4, window_bounds = array<i64: 8, 8>}]} {
    %c0_i32 = arith.constant 0 : i32
    %0 = arith.cmpi eq, %arg1, %c0_i32 : i32
    %1 = arith.extui %0 : i1 to i32
    %c0_i32_0 = arith.constant 0 : i32
    %2 = arith.cmpi ne, %1, %c0_i32_0 : i32
    scf.if %2 {
      %cst_11 = arith.constant 0.000000e+00 : f32
      %15 = vector.broadcast %cst_11 : f32 to vector<8x8xf32>
      %c0_12 = arith.constant 0 : index
      %c0_13 = arith.constant 0 : index
      %16 = vector.load %arg7[%c0_12, %c0_13] : memref<8x8xf32, #tpu.memory_space<vmem>>, vector<8x8xf32>
      tpu.vector_store %arg7[%c0_12, %c0_13], %15 {strides = array<i32>} : memref<8x8xf32, #tpu.memory_space<vmem>>, vector<8x8xf32>,
    } else {
    }
    %c0 = arith.constant 0 : index
    %c0_1 = arith.constant 0 : index
    %c0_2 = arith.constant 0 : index
    %3 = vector.load %arg2[%c0, %c0_1, %c0_2] : memref<8x8x32xf32, #tpu.memory_space<vmem>>, vector<8x8x32xf32>
    %c0_3 = arith.constant 0 : index
    %c0_4 = arith.constant 0 : index
    %4 = vector.load %arg3[%c0_3, %c0_4] : memref<1x32xf32, #tpu.memory_space<vmem>>, vector<1x32xf32>
    %c0_5 = arith.constant 0 : index
    %c0_6 = arith.constant 0 : index
    %5 = vector.load %arg7[%c0_5, %c0_6] : memref<8x8xf32, #tpu.memory_space<vmem>>, vector<8x8xf32>
    %6 = vector.shape_cast %4 : vector<1x32xf32> to vector<1x1x32xf32>
    %7 = vector.broadcast %6 : vector<1x1x32xf32> to vector<8x8x32xf32>
    %8 = arith.mulf %3, %7 : vector<8x8x32xf32>
    %cst = arith.constant dense<0.000000e+00> : vector<8x8xf32>
    %9 = vector.multi_reduction <add>, %8, %cst [2] : vector<8x8x32xf32> to vector<8x8xf32>
    %10 = arith.addf %5, %9 : vector<8x8xf32>
    %c0_7 = arith.constant 0 : index
    %c0_8 = arith.constant 0 : index
    %11 = vector.load %arg7[%c0_7, %c0_8] : memref<8x8xf32, #tpu.memory_space<vmem>>, vector<8x8xf32>
    tpu.vector_store %arg7[%c0_7, %c0_8], %10 {strides = array<i32>} : memref<8x8xf32, #tpu.memory_space<vmem>>, vector<8x8xf32>,
    %c0_i32_9 = arith.constant 0 : i32
    %12 = arith.cmpi eq, %arg1, %c0_i32_9 : i32
    %13 = arith.extui %12 : i1 to i32
    %c0_i32_10 = arith.constant 0 : i32
    %14 = arith.cmpi ne, %13, %c0_i32_10 : i32
    scf.if %14 {
      %c0_11 = arith.constant 0 : index
      %c0_12 = arith.constant 0 : index
      %15 = vector.load %arg7[%c0_11, %c0_12] : memref<8x8xf32, #tpu.memory_space<vmem>>, vector<8x8xf32>
      %c0_13 = arith.constant 0 : index
      %16 = memref.load %arg4[%c0_13] : memref<1xf32, #tpu.memory_space<smem>>
      %17 = vector.broadcast %16 : f32 to vector<8x8xf32>
      %18 = arith.addf %15, %17 : vector<8x8xf32>
      %c0_14 = arith.constant 0 : index
      %c0_15 = arith.constant 0 : index
      %19 = vector.load %arg5[%c0_14, %c0_15] : memref<8x8xi32, #tpu.memory_space<vmem>>, vector<8x8xi32>
      %c0_i32_16 = arith.constant 0 : i32
      %20 = vector.broadcast %c0_i32_16 : i32 to vector<8x8xi32>
      %21 = arith.cmpi ne, %19, %20 : vector<8x8xi32>
      %cst_17 = arith.constant 0xFF800000 : f32
      %22 = vector.broadcast %cst_17 : f32 to vector<8x8xf32>
      %23 = arith.select %21, %22, %18 : vector<8x8xi1>, vector<8x8xf32>
      %cst_18 = arith.constant dense<0xFF800000> : vector<8xf32>
      %24 = vector.multi_reduction <maximumf>, %23, %cst_18 [1] : vector<8x8xf32> to vector<8xf32>
      %25 = vector.shape_cast %24 : vector<8xf32> to vector<8x1xf32>
      %26 = vector.broadcast %25 : vector<8x1xf32> to vector<8x8xf32>
      %27 = arith.subf %23, %26 : vector<8x8xf32>
      %28 = math.exp %27 : vector<8x8xf32>
      %cst_19 = arith.constant dense<0.000000e+00> : vector<8xf32>
      %29 = vector.multi_reduction <add>, %28, %cst_19 [1] : vector<8x8xf32> to vector<8xf32>
      %30 = vector.shape_cast %29 : vector<8xf32> to vector<8x1xf32>
      %31 = vector.broadcast %30 : vector<8x1xf32> to vector<8x8xf32>
      %32 = arith.divf %28, %31 : vector<8x8xf32>
      %c0_20 = arith.constant 0 : index
      %c0_21 = arith.constant 0 : index
      %33 = vector.load %arg6[%c0_20, %c0_21] : memref<8x8xf32, #tpu.memory_space<vmem>>, vector<8x8xf32>
      tpu.vector_store %arg6[%c0_20, %c0_21], %32 {strides = array<i32>} : memref<8x8xf32, #tpu.memory_space<vmem>>, vector<8x8xf32>,
    } else {
    }
    return
  }
  func.func @transform_0(%arg0: i32, %arg1: i32) -> (i32, i32, i32) {
    %c0_i32 = arith.constant 0 : i32
    %c0_i32_0 = arith.constant 0 : i32
    return %arg0, %c0_i32, %arg1 : i32, i32, i32
  }
  func.func @transform_1(%arg0: i32, %arg1: i32) -> (i32, i32) {
    %c0_i32 = arith.constant 0 : i32
    %c0_i32_0 = arith.constant 0 : i32
    return %c0_i32, %arg1 : i32, i32
  }
  func.func @transform_2(%arg0: i32, %arg1: i32) -> i32 {
    %c0_i32 = arith.constant 0 : i32
    %c0_i32_0 = arith.constant 0 : i32
    return %c0_i32 : i32
  }
  func.func @transform_3(%arg0: i32, %arg1: i32) -> (i32, i32) {
    %c0_i32 = arith.constant 0 : i32
    %c0_i32_0 = arith.constant 0 : i32
    return %arg0, %c0_i32 : i32, i32
  }
  func.func @transform_4(%arg0: i32, %arg1: i32) -> (i32, i32) {
    %c0_i32 = arith.constant 0 : i32
    %c0_i32_0 = arith.constant 0 : i32
    return %arg0, %c0_i32 : i32, i32
  }
}

</mosaic_0001>

<llo_original>
// kernel: tpu_custom_call.1
$region0: #{tpu_custom_call.1}
  #allocation0 [shape = 'u32[]', space=smem, size = 0x4, offset = 0x4, fixed_abs, tag = 'smem constant byte address 0x4 - core index']
  #allocation1 [shape = 'u32[144,128]{1,0:T(1,128)}', space=vmem, size = 0x12000, scoped, tag = 'internal scratch']
  #allocation2 [shape = 'f32[8,8]{1,0:T(8,128)}', space=vmem, size = 0x1000, scoped, tag = 'scratch operand']
  #allocation3 [shape = 'f32[1]{0:T(128)S(6)}', space=smem, size = 0x200, scoped, tag = 'scoped memory for tpu_custom_call.1']
  %s0 = inlined_call_operand.hbm [shape: f32[16,8,32], index: 0, kind: input, shape index: {}]
  %s1 = inlined_call_operand.vmem [shape: f32[1,32], index: 1, kind: input, shape index: {}]
  %s2 = inlined_call_operand.<no memory space> [shape: f32[1], index: 2, kind: input, shape index: {}]
  %s3 = inlined_call_operand.vmem [shape: s32[16,8], index: 3, kind: input, shape index: {}]
  %s4 = inlined_call_operand.vmem [shape: f32[16,8], index: 4, kind: output, shape index: {}]
  %s5 = sld [smem:[#allocation0]]
  $region61: #{tpu_custom_call.1} parent=0
    _
  %s7 = ssub.s32 1, %s5
  %s8 = scalar_select 0, %s7, %s5
  %9 = sst [smem:[#allocation3]] %s2
  $region1: #{tpu_custom_call.1} parent=0
    #allocation4 [shape = 'u8[65536]{0}', space=vmem, size = 0x10000, scoped, tag = 'input window, operand 0']
    #allocation5 [shape = 's32[2]{0}', space=sflag, size = 0x8, scoped, tag = 'scoped memory for tpu_custom_call.1']
    %10 = vsyncpa [#allocation5], 0
    %s11 = scalar_lea.sflag [#allocation5], 1
    %12 = vsyncpa %s11, 0
    loop: start=0, step=1, limit=4
    $region2: #{tpu_custom_call.1} parent=1 // loop_pre_header
      _
    $region3: #{tpu_custom_call.1} parent=1 // loop_header
      %s14 = sphi 0, %s18
      %p15 = scmp.ge.s32.totalorder %s14, 4
      %s21 = sphi 0, %s33
      %s22 = sphi 0, %s29
      %s23 = sphi 0, %s21
      %s24 = sphi 0, %s22
      %s25 = sphi 0, %s23
      %s26 = sphi 0, %s24
      %s38 = sphi 0, %s40
      %s41 = sphi 0, %s38
      %s42 = sphi 0, %s41
      %s58 = sphi 0, %s42
      %s64 = sphi 0, %s66
      %s67 = sphi 0, %s64
      %s68 = sphi 0, %s67
      %s84 = sphi 0, %s68
      %s88 = sphi 0, %s88
      %s90 = sphi 0, %s88
      %s91 = sphi 0, %s90
      %s105 = sphi 0, %s91
      %s111 = sphi 0, %s113
      %s114 = sphi 0, %s111
      %s115 = sphi 0, %s114
      %s131 = sphi 0, %s115
      %s137 = sphi 0, %s139
      %s140 = sphi 0, %s137
      %s141 = sphi 0, %s140
      %s157 = sphi 0, %s141
    $region4: #{tpu_custom_call.1} parent=1 // loop_header_branch
      %17 = sbr.rel (%p15) target = $region8
    $region5: #{tpu_custom_call.1} parent=1 // loop_body
      %s19 = ssub.s32 %s14, 1
      %s20 = ssub.s32 %s14, 2
      %s27 = sadd.s32 1, %s22
      %p28 = scmp.ge.s32.totalorder %s27, 1
      %s29 = scalar_select %p28, 0, %s27
      %s30 = sadd.s32 1, %s21
      %s31 = scalar_select %p28, %s30, %s21
      %p32 = scmp.ge.s32.totalorder %s31, 2
      %s33 = scalar_select %p32, 0, %s31
      %s34 = ssub.s32 %s21, %s33
      %s35 = ssub.s32 %s22, %s29
      %s36 = sor.u32 %s34, %s35
      %p37 = scmp.eq.s32.totalorder %s36, 0
      %s39 = sadd.s32 %s38, 1
      %s40 = scalar_select %p37, %s38, %s39
      %p43 = pneg %p37
      %p44 = scmp.eq.s32.totalorder %s14, 1
      %p45 = por %p43, %p44
      %p46 = scmp.ne.s32.totalorder %s38, %s41
      %p47 = scmp.eq.s32.totalorder %s14, 0
      %p48 = por %p46, %p47
      %p49 = scmp.ne.s32.totalorder %s38, %s41
      %p50 = scmp.eq.s32.totalorder %s19, 1
      %p51 = por %p49, %p50
      %p52 = scmp.ne.s32.totalorder %s41, %s42
      %p53 = scmp.eq.s32.totalorder %s19, 0
      %p54 = por %p52, %p53
      %p55 = scmp.ne.s32.totalorder %s41, %s42
      %p56 = scmp.eq.s32.totalorder %s20, 1
      %p57 = por %p55, %p56
      %p59 = scmp.ne.s32.totalorder %s42, %s58
      %p60 = scmp.eq.s32.totalorder %s20, 0
      %p61 = por %p59, %p60
      %s62 = ssub.s32 %s22, %s29
      %p63 = scmp.eq.s32.totalorder %s62, 0
      %s65 = sadd.s32 %s64, 1
      %s66 = scalar_select %p63, %s64, %s65
      %p69 = pneg %p63
      %p70 = scmp.eq.s32.totalorder %s14, 1
      %p71 = por %p69, %p70
      %p72 = scmp.ne.s32.totalorder %s64, %s67
      %p73 = scmp.eq.s32.totalorder %s14, 0
      %p74 = por %p72, %p73
      %p75 = scmp.ne.s32.totalorder %s64, %s67
      %p76 = scmp.eq.s32.totalorder %s19, 1
      %p77 = por %p75, %p76
      %p78 = scmp.ne.s32.totalorder %s67, %s68
      %p79 = scmp.eq.s32.totalorder %s19, 0
      %p80 = por %p78, %p79
      %p81 = scmp.ne.s32.totalorder %s67, %s68
      %p82 = scmp.eq.s32.totalorder %s20, 1
      %p83 = por %p81, %p82
      %p85 = scmp.ne.s32.totalorder %s68, %s84
      %p86 = scmp.eq.s32.totalorder %s20, 0
      %p87 = por %p85, %p86
      %s89 = sadd.s32 %s88, 1
      %p92 = scmp.eq.s32.totalorder %s14, 1
      %p93 = scmp.ne.s32.totalorder %s88, %s90
      %p94 = scmp.eq.s32.totalorder %s14, 0
      %p95 = por %p93, %p94
      %p96 = scmp.ne.s32.totalorder %s88, %s90
      %p97 = scmp.eq.s32.totalorder %s19, 1
      %p98 = por %p96, %p97
      %p99 = scmp.ne.s32.totalorder %s90, %s91
      %p100 = scmp.eq.s32.totalorder %s19, 0
      %p101 = por %p99, %p100
      %p102 = scmp.ne.s32.totalorder %s90, %s91
      %p103 = scmp.eq.s32.totalorder %s20, 1
      %p104 = por %p102, %p103
      %p106 = scmp.ne.s32.totalorder %s91, %s105
      %p107 = scmp.eq.s32.totalorder %s20, 0
      %p108 = por %p106, %p107
      %s109 = ssub.s32 %s21, %s33
      %p110 = scmp.eq.s32.totalorder %s109, 0
      %s112 = sadd.s32 %s111, 1
      %s113 = scalar_select %p110, %s111, %s112
      %p116 = pneg %p110
      %p117 = scmp.eq.s32.totalorder %s14, 1
      %p118 = por %p116, %p117
      %p119 = scmp.ne.s32.totalorder %s111, %s114
      %p120 = scmp.eq.s32.totalorder %s14, 0
      %p121 = por %p119, %p120
      %p122 = scmp.ne.s32.totalorder %s111, %s114
      %p123 = scmp.eq.s32.totalorder %s19, 1
      %p124 = por %p122, %p123
      %p125 = scmp.ne.s32.totalorder %s114, %s115
      %p126 = scmp.eq.s32.totalorder %s19, 0
      %p127 = por %p125, %p126
      %p128 = scmp.ne.s32.totalorder %s114, %s115
      %p129 = scmp.eq.s32.totalorder %s20, 1
      %p130 = por %p128, %p129
      %p132 = scmp.ne.s32.totalorder %s115, %s131
      %p133 = scmp.eq.s32.totalorder %s20, 0
      %p134 = por %p132, %p133
      %s135 = ssub.s32 %s21, %s33
      %p136 = scmp.eq.s32.totalorder %s135, 0
      %s138 = sadd.s32 %s137, 1
      %s139 = scalar_select %p136, %s137, %s138
      %p142 = pneg %p136
      %p143 = scmp.eq.s32.totalorder %s14, 1
      %p144 = por %p142, %p143
      %p145 = scmp.ne.s32.totalorder %s137, %s140
      %p146 = scmp.eq.s32.totalorder %s14, 0
      %p147 = por %p145, %p146
      %p148 = scmp.ne.s32.totalorder %s137, %s140
      %p149 = scmp.eq.s32.totalorder %s19, 1
      %p150 = por %p148, %p149
      %p151 = scmp.ne.s32.totalorder %s140, %s141
      %p152 = scmp.eq.s32.totalorder %s19, 0
      %p153 = por %p151, %p152
      %p154 = scmp.ne.s32.totalorder %s140, %s141
      %p155 = scmp.eq.s32.totalorder %s20, 1
      %p156 = por %p154, %p155
      %p158 = scmp.ne.s32.totalorder %s141, %s157
      %p159 = scmp.eq.s32.totalorder %s20, 0
      %p160 = por %p158, %p159
      %p161 = scmp.le.s32.totalorder 1, %s14
      %p162 = scmp.lt.s32.totalorder %s14, 3
      %p163 = pnand %p161, %p162
      %p164 = pneg %p163
      // Predicated region
      $region9: #{tpu_custom_call.1} parent=5 // pred_check
        _
      $region10: #{tpu_custom_call.1} parent=5 // pred_check_branch
        %166 = sbr.rel (%p163) target = $region12
      $region11: #{tpu_custom_call.1} parent=5 // pred_region
        %s167 = ssub.s32 %s14, 1
        // Predicated region
        $region13: #{tpu_custom_call.1} parent=11 // pred_check
          %p168 = pneg %p80
        $region14: #{tpu_custom_call.1} parent=11 // pred_check_branch
          %170 = sbr.rel (%p168) target = $region16
        $region15: #{tpu_custom_call.1} parent=11 // pred_region
          %p171 = scmp.lt.s32.totalorder %s24, 0
          %s172 = scalar_select %p171, %s24, 0
          %s173 = scalar_lea.vmem %s1, %s172
        $region16: #{tpu_custom_call.1} parent=11 // pred_fallthru
          _
        // Predicated region
        $region17: #{tpu_custom_call.1} parent=11 // pred_check
          %p174 = pneg %p101
        $region18: #{tpu_custom_call.1} parent=11 // pred_check_branch
          %176 = sbr.rel (%p174) target = $region20
        $region19: #{tpu_custom_call.1} parent=11 // pred_region
          _
        $region20: #{tpu_custom_call.1} parent=11 // pred_fallthru
          _
      $region12: #{tpu_custom_call.1} parent=5 // pred_fallthru
        _
      %p177 = scmp.lt.s32.totalorder %s14, 2
      // Predicated region
      $region21: #{tpu_custom_call.1} parent=5 // pred_check
        %p178 = pneg %p177
      $region22: #{tpu_custom_call.1} parent=5 // pred_check_branch
        %180 = sbr.rel (%p178) target = $region24
      $region23: #{tpu_custom_call.1} parent=5 // pred_region
        // Predicated region
        $region25: #{tpu_custom_call.1} parent=23 // pred_check
          %p181 = pneg %p48
        $region26: #{tpu_custom_call.1} parent=23 // pred_check_branch
          %183 = sbr.rel (%p181) target = $region28
        $region27: #{tpu_custom_call.1} parent=23 // pred_region
          %s184 = sand.u32 %s38, 1
          %s185 = scalar_lea.sflag [#allocation5], %s184
          %s186 = sand.u32 %s38, 1
          %s187 = smul.addr %s186, 64
          %s188 = scalar_lea.vmem [#allocation4], %s187
          %s189 = smul.u32 8, %s21
          %s191 = ssub.s32 1024, 1024
          %192 = vsyncadd %s185, %s191
          %s193 = sadd.s32 %s22, %s189
          %s194 = smul.addr %s193, 128
          %s195 = scalar_lea.hbm %s0, %s194
          %s196 = sshll.u32 %s188, 4
          %s197 = int_to_ptr.vmem [resolvable:$true] %s196
          %202 = dma.hbm_to_vmem [thread:$0]  %s195, 1024, %s197, %s185, 128, 128, 8
        $region28: #{tpu_custom_call.1} parent=23 // pred_fallthru
          _
        // Predicated region
        $region29: #{tpu_custom_call.1} parent=23 // pred_check
          %p203 = pneg %p121
        $region30: #{tpu_custom_call.1} parent=23 // pred_check_branch
          %205 = sbr.rel (%p203) target = $region32
        $region31: #{tpu_custom_call.1} parent=23 // pred_region
          %p206 = scmp.lt.s32.totalorder %s21, 1
          %s207 = scalar_select %p206, %s21, 1
          %s208 = smul.addr %s207, 8
          %s209 = scalar_lea.vmem %s3, %s208
        $region32: #{tpu_custom_call.1} parent=23 // pred_fallthru
          _
      $region24: #{tpu_custom_call.1} parent=5 // pred_fallthru
        _
      %p210 = scmp.le.s32.totalorder 1, %s14
      %p211 = scmp.lt.s32.totalorder %s14, 3
      %p212 = pnand %p210, %p211
      %p213 = pneg %p212
      // Predicated region
      $region33: #{tpu_custom_call.1} parent=5 // pred_check
        _
      $region34: #{tpu_custom_call.1} parent=5 // pred_check_branch
        %215 = sbr.rel (%p212) target = $region36
      $region35: #{tpu_custom_call.1} parent=5 // pred_region
        %s216 = ssub.s32 %s14, 1
        %s217 = sand.u32 %s41, 1
        %s218 = scalar_lea.sflag [#allocation5], %s217
        %s219 = sand.u32 %s41, 1
        %s220 = smul.addr %s219, 64
        %s221 = scalar_lea.vmem [#allocation4], %s220
        // Predicated region
        $region37: #{tpu_custom_call.1} parent=35 // pred_check
          %p222 = pneg %p54
        $region38: #{tpu_custom_call.1} parent=35 // pred_check_branch
          %224 = sbr.rel (%p222) target = $region40
        $region39: #{tpu_custom_call.1} parent=35 // pred_region
          %225 = dma.done %s218, 1024
        $region40: #{tpu_custom_call.1} parent=35 // pred_fallthru
          _
        %s226 = sand.u32 %s41, 1
        %s227 = scalar_lea.sflag [#allocation5], %s226
        %s228 = sand.u32 %s41, 1
        %s229 = smul.addr %s228, 64
        %s230 = scalar_lea.vmem [#allocation4], %s229
        %p231 = pneg %p54
        %p232 = pneg %p51
        %p233 = scmp.lt.s32.totalorder %s24, 0
        %s234 = scalar_select %p233, %s24, 0
        %s235 = scalar_lea.vmem %s1, %s234
        %p236 = pneg %p80
        %p237 = pneg %p77
        %p238 = pneg %p101
        %p239 = pneg %p98
        %p240 = scmp.lt.s32.totalorder %s23, 1
        %s241 = scalar_select %p240, %s23, 1
        %s242 = smul.addr %s241, 8
        %s243 = scalar_lea.vmem %s3, %s242
        %p244 = pneg %p127
        %p245 = pneg %p124
        %p246 = pneg %p153
        %p247 = pneg %p150
        %p248 = scmp.lt.s32.totalorder %s23, 1
        %s249 = scalar_select %p248, %s23, 1
        %s250 = smul.addr %s249, 8
        %s251 = scalar_lea.vmem %s4, %s250
        %s252 = smul.u32 8, %s23
        %p253 = scmp.lt.s32.totalorder %s24, 0
        %s254 = scalar_select %p253, %s24, 0
        %s255 = scalar_lea.vmem %s1, %s254
        %p256 = scmp.lt.s32.totalorder %s23, 1
        %s257 = scalar_select %p256, %s23, 1
        %s258 = smul.addr %s257, 8
        %s259 = scalar_lea.vmem %s3, %s258
        %p260 = scmp.lt.s32.totalorder %s23, 1
        %s261 = scalar_select %p260, %s23, 1
        %s262 = smul.addr %s261, 8
        %s263 = scalar_lea.vmem %s4, %s262
        %p264 = scmp.eq.s32.totalorder %s24, 0
        // Predicated region
        $region41: #{tpu_custom_call.1} parent=35 // pred_check
          %p265 = pneg %p264
        $region42: #{tpu_custom_call.1} parent=35 // pred_check_branch
          %267 = sbr.rel (%p265) target = $region44
        $region43: #{tpu_custom_call.1} parent=35 // pred_region
          %vm268 = vcmask 64512
          %269 = vst.msk [vmem:[#allocation2] sm:$0xff] %vm268, 0.0
        $region44: #{tpu_custom_call.1} parent=35 // pred_fallthru
          _
        %v270 = vld [vmem:[%s221] sm:$0xff]
        %v271 = vld [vmem:[%s221 + $0x8] sm:$0xff]
        %v272 = vld [vmem:[%s221 + $0x10] sm:$0xff]
        %v273 = vld [vmem:[%s221 + $0x18] sm:$0xff]
        %v274 = vld [vmem:[%s221 + $0x20] sm:$0xff]
        %v275 = vld [vmem:[%s221 + $0x28] sm:$0xff]
        %v276 = vld [vmem:[%s221 + $0x30] sm:$0xff]
        %v277 = vld [vmem:[%s221 + $0x38] sm:$0xff]
        %v278 = vld [vmem:[%s255] sm:$0x1]
        %v279 = vld [vmem:[#allocation2] sm:$0xff]
        %v281 = vlaneseq
        %v282 = vshrl.u32 %v281, 7
        %v283 = vsub.s32 0, %v282
        %v284 = vrot.slane %v278, %v283
        %v286 = vmul.f32 %v270, %v284
        %v287 = vmul.f32 %v271, %v284
        %v288 = vmul.f32 %v272, %v284
        %v289 = vmul.f32 %v273, %v284
        %v290 = vmul.f32 %v274, %v284
        %v291 = vmul.f32 %v275, %v284
        %v292 = vmul.f32 %v276, %v284
        %v293 = vmul.f32 %v277, %v284
        %vm294 = vcmask 261120
        %v295 = vsel %vm294, %v286, 0.0
        %296 = vadd.xlane.f32.xlu0 %v295
        %v297 = vpop.xlane.xlu0 %296
        %v298 = vsel %vm294, %v287, 0.0
        %299 = vadd.xlane.f32.xlu0 %v298
        %v300 = vpop.xlane.xlu0 %299
        %v301 = vsel %vm294, %v288, 0.0
        %302 = vadd.xlane.f32.xlu0 %v301
        %v303 = vpop.xlane.xlu0 %302
        %v304 = vsel %vm294, %v289, 0.0
        %305 = vadd.xlane.f32.xlu0 %v304
        %v306 = vpop.xlane.xlu0 %305
        %v307 = vsel %vm294, %v290, 0.0
        %308 = vadd.xlane.f32.xlu0 %v307
        %v309 = vpop.xlane.xlu0 %308
        %v310 = vsel %vm294, %v291, 0.0
        %311 = vadd.xlane.f32.xlu0 %v310
        %v312 = vpop.xlane.xlu0 %311
        %v313 = vsel %vm294, %v292, 0.0
        %314 = vadd.xlane.f32.xlu0 %v313
        %v315 = vpop.xlane.xlu0 %314
        %v316 = vsel %vm294, %v293, 0.0
        %317 = vadd.xlane.f32.xlu0 %v316
        %v318 = vpop.xlane.xlu0 %317
        %v327 = vlaneseq
        %v328 = vand.u32 %v327, 127
        %v329 = vlaneseq
        %v330 = vshrl.u32 %v329, 7
        %v331 = vsub.s32 %v328, %v330
        %v332 = vrot.slane %v297, %v331
        %v333 = vlaneseq
        %v334 = vshrl.u32 %v333, 7
        %v335 = vsub.s32 %v328, %v334
        %v336 = vrot.slane %v300, %v335
        %v337 = vlaneseq
        %v338 = vshrl.u32 %v337, 7
        %v339 = vsub.s32 %v328, %v338
        %v340 = vrot.slane %v303, %v339
        %v341 = vlaneseq
        %v342 = vshrl.u32 %v341, 7
        %v343 = vsub.s32 %v328, %v342
        %v344 = vrot.slane %v306, %v343
        %v345 = vlaneseq
        %v346 = vshrl.u32 %v345, 7
        %v347 = vsub.s32 %v328, %v346
        %v348 = vrot.slane %v309, %v347
        %v349 = vlaneseq
        %v350 = vshrl.u32 %v349, 7
        %v351 = vsub.s32 %v328, %v350
        %v352 = vrot.slane %v312, %v351
        %v353 = vlaneseq
        %v354 = vshrl.u32 %v353, 7
        %v355 = vsub.s32 %v328, %v354
        %v356 = vrot.slane %v315, %v355
        %v357 = vlaneseq
        %v358 = vshrl.u32 %v357, 7
        %v359 = vsub.s32 %v328, %v358
        %v360 = vrot.slane %v318, %v359
        %vm361 = vcmask 1041409
        %v362 = vsel %vm361, %v336, %v332
        %vm363 = vcmask 1042434
        %v364 = vsel %vm363, %v340, %v362
        %vm365 = vcmask 1043459
        %v366 = vsel %vm365, %v344, %v364
        %vm367 = vcmask 1044484
        %v368 = vsel %vm367, %v348, %v366
        %vm369 = vcmask 1045509
        %v370 = vsel %vm369, %v352, %v368
        %vm371 = vcmask 1046534
        %v372 = vsel %vm371, %v356, %v370
        %vm373 = vcmask 1047559
        %v374 = vsel %vm373, %v360, %v372
        %v376 = vadd.f32 %v279, %v374
        %vm377 = vcmask 64512
        %378 = vst.msk [vmem:[#allocation2] sm:$0xff] %vm377, %v376
        // Predicated region
        $region45: #{tpu_custom_call.1} parent=35 // pred_check
          %p379 = pneg %p264
        $region46: #{tpu_custom_call.1} parent=35 // pred_check_branch
          %381 = sbr.rel (%p379) target = $region48
        $region47: #{tpu_custom_call.1} parent=35 // pred_region
          %v382 = vld [vmem:[#allocation2] sm:$0xff]
          %s383 = sld [smem:[#allocation3]]
          %v384 = vstv %s383
          %v385 = vadd.f32 %v382, %v384
          %v386 = vld [vmem:[%s259] sm:$0xff]
          %vm387 = vcmp.ne.s32.totalorder %v386, 0
          %v388 = vsel %vm387, -inf, %v385
          %v389 = vsel %vm377, %v388, -inf
          %390 = vmax.xlane.f32.xlu0 %v389
          %v391 = vpop.xlane.xlu0 %390
          %v392 = vsub.f32 %v388, %v391
          %v393 = vmul.f32 %v392, 1.442695
          %v394 = vpow.pop %v393
          %v395 = vsel %vm377, %v394, 0.0
          %396 = vadd.xlane.f32.xlu0 %v395
          %v397 = vpop.xlane.xlu0 %396
          %v398 = vrcp.pop %v397
          %v399 = vmul.f32 %v394, %v398
          %400 = vst.msk [vmem:[%s263] sm:$0xff] %vm377, %v399
        $region48: #{tpu_custom_call.1} parent=35 // pred_fallthru
          _
        %p401 = scmp.lt.s32.totalorder %s23, 1
        %s402 = scalar_select %p401, %s23, 1
        %s403 = smul.addr %s402, 8
        %s404 = scalar_lea.vmem %s4, %s403
        // Predicated region
        $region49: #{tpu_custom_call.1} parent=35 // pred_check
          %p405 = pneg %p150
        $region50: #{tpu_custom_call.1} parent=35 // pred_check_branch
          %407 = sbr.rel (%p405) target = $region52
        $region51: #{tpu_custom_call.1} parent=35 // pred_region
          _
        $region52: #{tpu_custom_call.1} parent=35 // pred_fallthru
          _
      $region36: #{tpu_custom_call.1} parent=5 // pred_fallthru
        _
      %p408 = scmp.le.s32.totalorder 2, %s14
      // Predicated region
      $region53: #{tpu_custom_call.1} parent=5 // pred_check
        %p409 = pneg %p408
      $region54: #{tpu_custom_call.1} parent=5 // pred_check_branch
        %411 = sbr.rel (%p409) target = $region56
      $region55: #{tpu_custom_call.1} parent=5 // pred_region
        %s412 = ssub.s32 %s14, 2
        // Predicated region
        $region57: #{tpu_custom_call.1} parent=55 // pred_check
          %p413 = pneg %p156
        $region58: #{tpu_custom_call.1} parent=55 // pred_check_branch
          %415 = sbr.rel (%p413) target = $region60
        $region59: #{tpu_custom_call.1} parent=55 // pred_region
          %p416 = scmp.lt.s32.totalorder %s25, 1
          %s417 = scalar_select %p416, %s25, 1
          %s418 = smul.addr %s417, 8
          %s419 = scalar_lea.vmem %s4, %s418
        $region60: #{tpu_custom_call.1} parent=55 // pred_fallthru
          _
      $region56: #{tpu_custom_call.1} parent=5 // pred_fallthru
        _
    $region6: #{tpu_custom_call.1} parent=1 // loop_footer
      %s18 = sadd.s32 1, %s14
    $region7: #{tpu_custom_call.1} parent=1 // loop_footer_branch
      %13 = sbr.rel target = $region3
    $region8: #{tpu_custom_call.1} parent=1 // loop_exit
      _
    %420 = vsyncpa [#allocation5], 1
    %s421 = scalar_lea.sflag [#allocation5], 1
    %422 = vsyncpa %s421, 1

</llo_original>
